<compile_context>
chip_gen: v7x
topology: tpu7x:2x2x1
jax: 0.10.0
libtpu: 0.0.40
codegen_flags: <defaults>
</compile_context>

<pallas_src>
import functools

import jax
import jax.numpy as jnp
from jax import lax
from jax.experimental import pallas as pl
from jax.experimental.pallas import tpu as pltpu


def _vq_kernel(x_ref, codes_ref, c2h_ref, q_ref, stats_ref, *,
               needs_mask, hw_valid, stats_w):
    """One (image-block, pixel-tile) cell of the VQ hot path.

    x_ref:     (nb, C, Lt)  input pixels, channels on sublanes, pixels on lanes
    codes_ref: (Kc, C)      full (possibly concatenated) codebook
    c2h_ref:   (Kc, 1)      0.5 * ||c||^2 (hoisted in the wrapper)
    q_ref:     (nb, C, Lt)  quantized pixels (lane-dense store)
    stats_ref: (1, 1, stats_w) packed partials: lanes [0,Kc) = code counts,
                              lane Kc = sum of squared errors, rest zero.
    """
    codes = codes_ref[...]                                      # (Kc, C) f32
    c2h = c2h_ref[...]                                          # (Kc, 1)
    kc = codes.shape[0]
    nb, _, lt = x_ref.shape

    # Grid-/image-invariant values hoisted out of the per-image loop
    # (JAX does not CSE broadcasts/iotas).
    iota = lax.broadcasted_iota(jnp.int32, (kc, lt), 0)         # (Kc, Lt)
    ones_row = jnp.ones((1, lt), jnp.float32)
    if needs_mask:
        lane = lax.broadcasted_iota(jnp.int32, (1, lt), 1) + pl.program_id(1) * lt
        valid = (lane < hw_valid).astype(jnp.float32)           # (1, Lt)

    stats_acc = jnp.zeros((1, kc + 1), jnp.float32)

    # Static unrolled loop over the images in this block (nb is small);
    # amortizes per-grid-step overhead while keeping every op fully lane-dense.
    for i in range(nb):
        x = x_ref[i]                                            # (C, Lt)

        # argmin_k ||x - c_k||^2 == argmin_k (0.5*||c_k||^2 - c_k . x):
        # ||x||^2 is a per-pixel constant and the factor 2 is folded into c2h.
        xc = lax.dot_general(codes, x, (((1,), (0,)), ((), ())),
                             preferred_element_type=jnp.float32)   # (Kc, Lt)
        score = c2h - xc                                            # (Kc, Lt)

        # first minimal code index per pixel (matches torch.argmin tie-break)
        # TODO(synk): try a fused jnp.argmin(score, axis=0) once verified to
        #             lower well (halves the XLU traffic of this stage).
        min_s = jnp.min(score, axis=0, keepdims=True)               # (1, Lt)
        first_idx = jnp.min(jnp.where(score == min_s, iota, kc),
                            axis=0, keepdims=True)                  # (1, Lt)
        enc = (iota == first_idx).astype(jnp.float32)               # (Kc, Lt)

        # quantized^T = codes^T @ one_hot^T  -> lane-dense store
        q = lax.dot_general(codes, enc, (((0,), (0,)), ((), ())),
                            preferred_element_type=jnp.float32)     # (C, Lt)
        q_ref[i] = q.astype(q_ref.dtype)

        # packed per-block partials (reduced in the wrapper -> grid stays
        # fully parallel, no carried accumulators)
        diff = q - x
        d2 = jnp.sum(diff * diff, axis=0, keepdims=True)            # (1, Lt)
        if needs_mask:
            enc = enc * valid
            d2 = d2 * valid
        counts = lax.dot_general(ones_row, enc, (((1,), (1,)), ((), ())),
                                 preferred_element_type=jnp.float32)  # (1, Kc)
        sse = jnp.sum(d2, axis=1, keepdims=True)                      # (1, 1)
        stats_acc = stats_acc + jnp.concatenate([counts, sse], axis=1)

    pad = stats_w - (kc + 1)
    if pad:
        stats_acc = jnp.concatenate(
            [stats_acc, jnp.zeros((1, pad), jnp.float32)], axis=1)
    stats_ref[0] = stats_acc                                        # lane-dense


def _vmem_budget_bytes():
    """Generation-aware VMEM budget for tile sizing.

    v7x has 64 MiB VMEM per TensorCore (32 MiB default scoped), v5e/v6e have
    128 MiB (16/32 MiB default scoped).  1/8 of capacity keeps every
    generation inside its default scoped limit, so vmem_limit_bytes never has
    to be raised.
    """
    try:
        cap = pltpu.get_tpu_info().vmem_capacity_bytes
    except Exception:  # query unavailable -> assume smallest (v7x per-TC)
        cap = 64 << 20
    return max(4 << 20, cap // 8)


def _choose_tiling(n, hw_pad, c, kc):
    """Pick (nb images per step, pixel lane-tile) for the (nb, C, lt) blocks."""
    budget = _vmem_budget_bytes()

    def step_bytes(nb, lt):
        io = 2 * 2 * nb * c * lt * 4      # x + q blocks, double-buffered
        inter = 6 * kc * lt * 4           # xc/score/iota/enc-class temporaries
        per_img = 3 * c * lt * 4          # q/diff live copies
        return io + inter + per_img

    # 1) lane tile: largest multiple of 128 dividing hw_pad that fits budget.
    lane_tiles = [d for d in range(hw_pad, 0, -128) if hw_pad % d == 0]
    lt = next((d for d in lane_tiles if step_bytes(1, d) <= budget), 128)

    # 2) batch several images per step when each image contributes few lanes
    #    (amortizes ~0.35us per-grid-step overhead and tiny DMAs).
    nb = 1
    if n > 1 and lt < 512:
        target = max(1, 512 // lt)
        for cand in range(min(n, target), 0, -1):
            if n % cand == 0 and step_bytes(cand, lt) <= budget:
                nb = cand
                break

    # 3) min-grid rule: keep >=2 grid cells when possible so v7x's second
    #    TensorCore has work (both grid axes are "parallel").
    def cells(nb_, lt_):
        return (n // nb_) * (hw_pad // lt_)

    if cells(nb, lt) < 2:
        smaller = [d for d in range(lt - 128, 0, -128) if hw_pad % d == 0]
        if smaller:
            lt = smaller[0]
        else:
            divs = [d for d in range(nb - 1, 0, -1)
                    if n % d == 0 and cells(d, lt) >= 2]
            if divs:
                nb = divs[0]

    return nb, lt


def _run_vq_kernel(x_ncl, codes, c2h, *, nb, lt, hw_valid):
    n, c, hw_pad = x_ncl.shape
    kc = codes.shape[0]
    num_b = n // nb
    num_p = hw_pad // lt
    g = num_b * num_p
    stats_w = ((kc + 1 + 127) // 128) * 128   # lane-dense packed stats width

    kernel = functools.partial(
        _vq_kernel,
        needs_mask=(hw_valid != hw_pad),
        hw_valid=hw_valid,
        stats_w=stats_w,
    )

    out_shapes = (
        jax.ShapeDtypeStruct((n, c, hw_pad), jnp.float32),   # quantized (N,C,HWp)
        jax.ShapeDtypeStruct((g, 1, stats_w), jnp.float32),  # packed counts+SSE
    )
    return pl.pallas_call(
        kernel,
        out_shape=out_shapes,
        grid_spec=pltpu.PrefetchScalarGridSpec(
            num_scalar_prefetch=0,
            grid=(num_b, num_p),
            in_specs=[
                pl.BlockSpec((nb, c, lt), lambda b, p: (b, 0, p)),
                pl.BlockSpec((kc, c), lambda b, p: (0, 0)),
                pl.BlockSpec((kc, 1), lambda b, p: (0, 0)),
            ],
            out_specs=[
                pl.BlockSpec((nb, c, lt), lambda b, p: (b, 0, p)),
                pl.BlockSpec((1, 1, stats_w),
                             lambda b, p: (b * num_p + p, 0, 0)),
            ],
        ),
        compiler_params=pltpu.CompilerParams(
            # No grid-carried state -> both axes independent; v7x can shard
            # the grid across its two TensorCores.
            dimension_semantics=("parallel", "parallel"),
        ),
    )(x_ncl, codes, c2h)


@functools.partial(jax.jit, static_argnames=("idx", "commitment_cost"))
def ext_vq_forward(inputs_nchw, codebook0, codebook1, idx, commitment_cost):
    """Forward pass of extVQ.

    inputs_nchw: (N, C, H, W) with C == embedding_dim
    Returns (quantized_nchw, loss, perplexity) — same forward semantics as the
    PyTorch module.
    """
    n, c, h, w = inputs_nchw.shape
    hw = h * w
    m = n * hw  # rows of the PyTorch flat_input

    # NCHW -> (N, C, H*W): pure reshape, no transpose / extra HBM traffic.
    x_ncl = inputs_nchw.reshape(n, c, hw).astype(jnp.float32)

    # Pad the pixel axis to a multiple of 128 so every DMA / store stays
    # lane-dense; padded pixels are masked out of counts/SSE in the kernel.
    hw_pad = ((hw + 127) // 128) * 128
    if hw_pad != hw:
        x_ncl = jnp.pad(x_ncl, ((0, 0), (0, 0), (0, hw_pad - hw)))

    if idx == 0:
        codes = codebook0
    else:
        codes = jnp.concatenate([codebook0, codebook1], axis=0)
    codes = codes.astype(jnp.float32)
    kc = codes.shape[0]

    # Hoisted half-norms: argmin(||x-c||^2) == argmin(0.5*||c||^2 - c.x).
    c2h = 0.5 * jnp.sum(codes * codes, axis=1, keepdims=True)        # (Kc, 1)

    nb, lt = _choose_tiling(n, hw_pad, c, kc)
    quant_pad, stats_p = _run_vq_kernel(x_ncl, codes, c2h,
                                        nb=nb, lt=lt, hw_valid=hw)

    quant_ncl = quant_pad[:, :, :hw] if hw_pad != hw else quant_pad
    quantized_nchw = quant_ncl.reshape(n, c, h, w)
    # TODO(synk): add a custom VJP for the straight-through estimator
    #             (x + stop_gradient(q - x)); forward-only here.

    stats = jnp.sum(stats_p, axis=(0, 1))                            # (stats_w,)
    counts = stats[:kc]                                              # (Kc,)
    sse = stats[kc]

    # forward value: e_latent_loss == q_latent_loss == mse(q, x)
    mse = sse / jnp.float32(m * c)
    loss = mse + commitment_cost * mse

    avg_probs = counts / jnp.float32(m)
    perplexity = jnp.exp(-jnp.sum(avg_probs * jnp.log(avg_probs + 1e-10)))

    return quantized_nchw, loss, perplexity


def _reference_forward(inputs_nchw, codes, commitment_cost):
    """Pure-JAX mirror of the PyTorch forward (for correctness checking)."""
    n, c, h, w = inputs_nchw.shape
    x_nhwc = jnp.transpose(inputs_nchw, (0, 2, 3, 1))
    flat = x_nhwc.reshape(-1, c).astype(jnp.float32)
    codes = codes.astype(jnp.float32)
    d = (jnp.sum(flat ** 2, axis=1, keepdims=True)
         + jnp.sum(codes ** 2, axis=1) - 2.0 * flat @ codes.T)
    idxs = jnp.argmin(d, axis=1)
    enc = jax.nn.one_hot(idxs, codes.shape[0], dtype=jnp.float32)
    q = (enc @ codes).reshape(x_nhwc.shape)
    mse = jnp.mean((q - x_nhwc) ** 2)
    loss = mse + commitment_cost * mse
    avg = jnp.mean(enc, axis=0)
    perp = jnp.exp(-jnp.sum(avg * jnp.log(avg + 1e-10)))
    return jnp.transpose(q, (0, 3, 1, 2)), loss, perp


if __name__ == "__main__":
    # Module hyper-parameters (small, consistent with the PyTorch __init__)
    num_embeddings = 8
    embedding_dim = 4          # == channel dim of the NCHW input
    commitment_cost = 0.25
    silo_idx = 1               # use shared + additional codebook

    key = jax.random.PRNGKey(0)
    k_x, k_e0, k_e1 = jax.random.split(key, 3)

    # Deterministic "weights": both nn.Embedding tables are N(0, 1) initialized.
    codebook0 = jax.random.normal(k_e0, (num_embeddings, embedding_dim), jnp.float32)
    codebook1 = jax.random.normal(k_e1, (num_embeddings, embedding_dim), jnp.float32)

    # Input activation, NCHW like the PyTorch forward expects.
    x = jax.random.normal(k_x, (2, embedding_dim, 16, 16), jnp.float32)

    quantized, loss, perplexity = ext_vq_forward(
        x, codebook0, codebook1, idx=silo_idx, commitment_cost=commitment_cost)
    jax.block_until_ready((quantized, loss, perplexity))

    # Pure-JAX reference check (same codebook concatenation as idx != 0).
    codes_all = jnp.concatenate([codebook0, codebook1], axis=0)
    q_ref, loss_ref, perp_ref = _reference_forward(x, codes_all, commitment_cost)

    assert quantized.shape == x.shape
    assert quantized.dtype == jnp.float32
    assert bool(jnp.isfinite(loss)) and bool(jnp.isfinite(perplexity))
    assert float(jnp.max(jnp.abs(quantized - q_ref))) < 1e-4
    assert abs(float(loss) - float(loss_ref)) < 1e-5 + 1e-4 * abs(float(loss_ref))
    assert abs(float(perplexity) - float(perp_ref)) < 1e-3
    # perplexity of a 2*num_embeddings codebook must lie in [1, 2K]
    assert 1.0 <= float(perplexity) <= 2.0 * num_embeddings + 1e-3
    print("KERNEL_OK")
</pallas_src>

<mosaic_0001>
module attributes {stable_mosaic.version = 11 : i64} {
  func.func @_vq_kernel(%arg0: i32, %arg1: i32, %arg2: memref<2x4x128xf32, #tpu.memory_space<vmem>>, %arg3: memref<16x4xf32, #tpu.memory_space<vmem>>, %arg4: memref<16x1xf32, #tpu.memory_space<vmem>>, %arg5: memref<2x4x128xf32, #tpu.memory_space<vmem>>, %arg6: memref<1x1x128xf32, #tpu.memory_space<vmem>>) attributes {dimension_semantics = [#tpu.dimension_semantics<parallel>, #tpu.dimension_semantics<parallel>], iteration_bounds = array<i64: 1, 2>, scalar_prefetch = 0 : i64, scratch_operands = 0 : i64, tpu.core_type = #tpu.core_type<tc>, window_params = [{transform_indices = @transform_0, window_bounds = array<i64: 2, 4, 128>}, {pipeline_mode = #tpu.pipeline_mode<synchronous>, transform_indices = @transform_1, window_bounds = array<i64: 16, 4>}, {pipeline_mode = #tpu.pipeline_mode<synchronous>, transform_indices = @transform_2, window_bounds = array<i64: 16, 1>}, {transform_indices = @transform_3, window_bounds = array<i64: 2, 4, 128>}, {transform_indices = @transform_4, window_bounds = array<i64: 1, 1, 128>}]} {
    %c0 = arith.constant 0 : index
    %c0_0 = arith.constant 0 : index
    %0 = vector.load %arg3[%c0, %c0_0] : memref<16x4xf32, #tpu.memory_space<vmem>>, vector<16x4xf32>
    %c0_1 = arith.constant 0 : index
    %c0_2 = arith.constant 0 : index
    %1 = vector.load %arg4[%c0_1, %c0_2] : memref<16x1xf32, #tpu.memory_space<vmem>>, vector<16x1xf32>
    %2 = tpu.iota {dimensions = array<i32: 0>} : vector<16x128xi32>
    %cst = arith.constant 1.000000e+00 : f32
    %3 = vector.broadcast %cst : f32 to vector<1x128xf32>
    %cst_3 = arith.constant 0.000000e+00 : f32
    %4 = vector.broadcast %cst_3 : f32 to vector<1x17xf32>
    %c0_4 = arith.constant 0 : index
    %c0_5 = arith.constant 0 : index
    %c0_6 = arith.constant 0 : index
    %5 = vector.load %arg2[%c0_4, %c0_5, %c0_6] : memref<2x4x128xf32, #tpu.memory_space<vmem>>, vector<1x4x128xf32>
    %6 = vector.shape_cast %5 : vector<1x4x128xf32> to vector<4x128xf32>
    %cst_7 = arith.constant dense<0.000000e+00> : vector<16x128xf32>
    %7 = tpu.matmul %0, %6, %cst_7 {dimension_numbers = #tpu.dot_dimension_numbers<[1], [0], [0], [1], [0, 0, 1, 1], [], []>} : vector<16x4xf32>, vector<4x128xf32>, vector<16x128xf32> -> vector<16x128xf32>
    %8 = vector.broadcast %1 : vector<16x1xf32> to vector<16x128xf32>
    %9 = arith.subf %8, %7 : vector<16x128xf32>
    %cst_8 = arith.constant dense<0x7F800000> : vector<128xf32>
    %10 = vector.multi_reduction <minimumf>, %9, %cst_8 [0] : vector<16x128xf32> to vector<128xf32>
    %11 = vector.shape_cast %10 : vector<128xf32> to vector<1x128xf32>
    %12 = vector.broadcast %11 : vector<1x128xf32> to vector<16x128xf32>
    %13 = arith.cmpf oeq, %9, %12 : vector<16x128xf32>
    %c16_i32 = arith.constant 16 : i32
    %14 = vector.broadcast %c16_i32 : i32 to vector<16x128xi32>
    %15 = arith.select %13, %2, %14 : vector<16x128xi1>, vector<16x128xi32>
    %cst_9 = arith.constant dense<2147483647> : vector<128xi32>
    %16 = vector.multi_reduction <minsi>, %15, %cst_9 [0] : vector<16x128xi32> to vector<128xi32>
    %17 = vector.shape_cast %16 : vector<128xi32> to vector<1x128xi32>
    %18 = vector.broadcast %17 : vector<1x128xi32> to vector<16x128xi32>
    %19 = arith.cmpi eq, %2, %18 : vector<16x128xi32>
    %20 = arith.extui %19 : vector<16x128xi1> to vector<16x128xi32>
    %21 = arith.sitofp %20 : vector<16x128xi32> to vector<16x128xf32>
    %cst_10 = arith.constant dense<0.000000e+00> : vector<4x128xf32>
    %22 = tpu.matmul %0, %21, %cst_10 {dimension_numbers = #tpu.dot_dimension_numbers<[0], [0], [1], [1], [0, 1, 1, 1], [], []>} : vector<16x4xf32>, vector<16x128xf32>, vector<4x128xf32> -> vector<4x128xf32>
    %c0_11 = arith.constant 0 : index
    %c0_12 = arith.constant 0 : index
    %c0_13 = arith.constant 0 : index
    %23 = vector.load %arg5[%c0_11, %c0_12, %c0_13] : memref<2x4x128xf32, #tpu.memory_space<vmem>>, vector<1x4x128xf32>
    %24 = vector.shape_cast %23 : vector<1x4x128xf32> to vector<4x128xf32>
    %25 = vector.shape_cast %22 : vector<4x128xf32> to vector<1x4x128xf32>
    tpu.vector_store %arg5[%c0_11, %c0_12, %c0_13], %25 {strides = array<i32>} : memref<2x4x128xf32, #tpu.memory_space<vmem>>, vector<1x4x128xf32>,
    %26 = arith.subf %22, %6 : vector<4x128xf32>
    %27 = arith.mulf %26, %26 : vector<4x128xf32>
    %cst_14 = arith.constant dense<0.000000e+00> : vector<128xf32>
    %28 = vector.multi_reduction <add>, %27, %cst_14 [0] : vector<4x128xf32> to vector<128xf32>
    %29 = vector.shape_cast %28 : vector<128xf32> to vector<1x128xf32>
    %cst_15 = arith.constant dense<0.000000e+00> : vector<1x16xf32>
    %30 = tpu.matmul %3, %21, %cst_15 {dimension_numbers = #tpu.dot_dimension_numbers<[1], [1], [0], [0], [0, 0, 1, 0], [], []>} : vector<1x128xf32>, vector<16x128xf32>, vector<1x16xf32> -> vector<1x16xf32>
    %cst_16 = arith.constant dense<0.000000e+00> : vector<1xf32>
    %31 = vector.multi_reduction <add>, %29, %cst_16 [1] : vector<1x128xf32> to vector<1xf32>
    %32 = vector.shape_cast %31 : vector<1xf32> to vector<1x1xf32>
    %33 = tpu.concatenate %30, %32 in 1 : vector<1x16xf32>, vector<1x1xf32> -> vector<1x17xf32>
    %34 = arith.addf %4, %33 : vector<1x17xf32>
    %c1 = arith.constant 1 : index
    %c0_17 = arith.constant 0 : index
    %c0_18 = arith.constant 0 : index
    %35 = vector.load %arg2[%c1, %c0_17, %c0_18] : memref<2x4x128xf32, #tpu.memory_space<vmem>>, vector<1x4x128xf32>
    %36 = vector.shape_cast %35 : vector<1x4x128xf32> to vector<4x128xf32>
    %cst_19 = arith.constant dense<0.000000e+00> : vector<16x128xf32>
    %37 = tpu.matmul %0, %36, %cst_19 {dimension_numbers = #tpu.dot_dimension_numbers<[1], [0], [0], [1], [0, 0, 1, 1], [], []>} : vector<16x4xf32>, vector<4x128xf32>, vector<16x128xf32> -> vector<16x128xf32>
    %38 = vector.broadcast %1 : vector<16x1xf32> to vector<16x128xf32>
    %39 = arith.subf %38, %37 : vector<16x128xf32>
    %cst_20 = arith.constant dense<0x7F800000> : vector<128xf32>
    %40 = vector.multi_reduction <minimumf>, %39, %cst_20 [0] : vector<16x128xf32> to vector<128xf32>
    %41 = vector.shape_cast %40 : vector<128xf32> to vector<1x128xf32>
    %42 = vector.broadcast %41 : vector<1x128xf32> to vector<16x128xf32>
    %43 = arith.cmpf oeq, %39, %42 : vector<16x128xf32>
    %c16_i32_21 = arith.constant 16 : i32
    %44 = vector.broadcast %c16_i32_21 : i32 to vector<16x128xi32>
    %45 = arith.select %43, %2, %44 : vector<16x128xi1>, vector<16x128xi32>
    %cst_22 = arith.constant dense<2147483647> : vector<128xi32>
    %46 = vector.multi_reduction <minsi>, %45, %cst_22 [0] : vector<16x128xi32> to vector<128xi32>
    %47 = vector.shape_cast %46 : vector<128xi32> to vector<1x128xi32>
    %48 = vector.broadcast %47 : vector<1x128xi32> to vector<16x128xi32>
    %49 = arith.cmpi eq, %2, %48 : vector<16x128xi32>
    %50 = arith.extui %49 : vector<16x128xi1> to vector<16x128xi32>
    %51 = arith.sitofp %50 : vector<16x128xi32> to vector<16x128xf32>
    %cst_23 = arith.constant dense<0.000000e+00> : vector<4x128xf32>
    %52 = tpu.matmul %0, %51, %cst_23 {dimension_numbers = #tpu.dot_dimension_numbers<[0], [0], [1], [1], [0, 1, 1, 1], [], []>} : vector<16x4xf32>, vector<16x128xf32>, vector<4x128xf32> -> vector<4x128xf32>
    %c1_24 = arith.constant 1 : index
    %c0_25 = arith.constant 0 : index
    %c0_26 = arith.constant 0 : index
    %53 = vector.load %arg5[%c1_24, %c0_25, %c0_26] : memref<2x4x128xf32, #tpu.memory_space<vmem>>, vector<1x4x128xf32>
    %54 = vector.shape_cast %53 : vector<1x4x128xf32> to vector<4x128xf32>
    %55 = vector.shape_cast %52 : vector<4x128xf32> to vector<1x4x128xf32>
    tpu.vector_store %arg5[%c1_24, %c0_25, %c0_26], %55 {strides = array<i32>} : memref<2x4x128xf32, #tpu.memory_space<vmem>>, vector<1x4x128xf32>,
    %56 = arith.subf %52, %36 : vector<4x128xf32>
    %57 = arith.mulf %56, %56 : vector<4x128xf32>
    %cst_27 = arith.constant dense<0.000000e+00> : vector<128xf32>
    %58 = vector.multi_reduction <add>, %57, %cst_27 [0] : vector<4x128xf32> to vector<128xf32>
    %59 = vector.shape_cast %58 : vector<128xf32> to vector<1x128xf32>
    %cst_28 = arith.constant dense<0.000000e+00> : vector<1x16xf32>
    %60 = tpu.matmul %3, %51, %cst_28 {dimension_numbers = #tpu.dot_dimension_numbers<[1], [1], [0], [0], [0, 0, 1, 0], [], []>} : vector<1x128xf32>, vector<16x128xf32>, vector<1x16xf32> -> vector<1x16xf32>
    %cst_29 = arith.constant dense<0.000000e+00> : vector<1xf32>
    %61 = vector.multi_reduction <add>, %59, %cst_29 [1] : vector<1x128xf32> to vector<1xf32>
    %62 = vector.shape_cast %61 : vector<1xf32> to vector<1x1xf32>
    %63 = tpu.concatenate %60, %62 in 1 : vector<1x16xf32>, vector<1x1xf32> -> vector<1x17xf32>
    %64 = arith.addf %34, %63 : vector<1x17xf32>
    %cst_30 = arith.constant 0.000000e+00 : f32
    %65 = vector.broadcast %cst_30 : f32 to vector<1x111xf32>
    %66 = tpu.concatenate %64, %65 in 1 : vector<1x17xf32>, vector<1x111xf32> -> vector<1x128xf32>
    %c0_31 = arith.constant 0 : index
    %c0_32 = arith.constant 0 : index
    %c0_33 = arith.constant 0 : index
    %67 = vector.load %arg6[%c0_31, %c0_32, %c0_33] : memref<1x1x128xf32, #tpu.memory_space<vmem>>, vector<1x1x128xf32>
    %68 = vector.shape_cast %67 : vector<1x1x128xf32> to vector<1x128xf32>
    %69 = vector.shape_cast %66 : vector<1x128xf32> to vector<1x1x128xf32>
    tpu.vector_store %arg6[%c0_31, %c0_32, %c0_33], %69 {strides = array<i32>} : memref<1x1x128xf32, #tpu.memory_space<vmem>>, vector<1x1x128xf32>,
    return
  }
  func.func @transform_0(%arg0: i32, %arg1: i32) -> (i32, i32, i32) {
    %c0_i32 = arith.constant 0 : i32
    %c0_i32_0 = arith.constant 0 : i32
    return %arg0, %c0_i32, %arg1 : i32, i32, i32
  }
  func.func @transform_1(%arg0: i32, %arg1: i32) -> (i32, i32) {
    %c0_i32 = arith.constant 0 : i32
    %c0_i32_0 = arith.constant 0 : i32
    %c0_i32_1 = arith.constant 0 : i32
    return %c0_i32, %c0_i32_0 : i32, i32
  }
  func.func @transform_2(%arg0: i32, %arg1: i32) -> (i32, i32) {
    %c0_i32 = arith.constant 0 : i32
    %c0_i32_0 = arith.constant 0 : i32
    %c0_i32_1 = arith.constant 0 : i32
    return %c0_i32, %c0_i32_0 : i32, i32
  }
  func.func @transform_3(%arg0: i32, %arg1: i32) -> (i32, i32, i32) {
    %c0_i32 = arith.constant 0 : i32
    %c0_i32_0 = arith.constant 0 : i32
    return %arg0, %c0_i32, %arg1 : i32, i32, i32
  }
  func.func @transform_4(%arg0: i32, %arg1: i32) -> (i32, i32, i32) {
    %c2_i32 = arith.constant 2 : i32
    %0 = arith.muli %arg0, %c2_i32 : i32
    %1 = arith.addi %0, %arg1 : i32
    %c0_i32 = arith.constant 0 : i32
    %c0_i32_0 = arith.constant 0 : i32
    %c0_i32_1 = arith.constant 0 : i32
    return %1, %c0_i32, %c0_i32_0 : i32, i32, i32
  }
}

</mosaic_0001>

<llo_original>
// kernel: ext_vq_forward.1
$region0: #{ext_vq_forward.1}
  #allocation0 [shape = 'u32[]', space=smem, size = 0x4, offset = 0x4, fixed_abs, tag = 'smem constant byte address 0x4 - core index']
  #allocation1 [shape = 'u32[144,128]{1,0:T(1,128)}', space=vmem, size = 0x12000, scoped, tag = 'internal scratch']
  %s0 = inlined_call_operand.vmem [shape: f32[2,4,256], index: 0, kind: input, shape index: {}]
  %s1 = inlined_call_operand.vmem [shape: f32[16,4], index: 1, kind: input, shape index: {}]
  %s2 = inlined_call_operand.vmem [shape: f32[16,1], index: 2, kind: input, shape index: {}]
  %s3 = inlined_call_operand.vmem [shape: f32[2,4,256], index: 3, kind: output, shape index: {0}]
  %s4 = inlined_call_operand.vmem [shape: f32[2,1,128], index: 4, kind: output, shape index: {1}]
  %5 = xla_tuple %s3, %s4
  %s6 = sld [smem:[#allocation0]]
  $region131: #{ext_vq_forward.1} parent=0
    _
  %s8 = ssub.s32 1, %s6
  %s9 = scalar_select 0, %s8, %s6
  $region1: #{ext_vq_forward.1} parent=0
    #allocation2 [shape = 'u8[8192]{0}', space=vmem, size = 0x2000, scoped, tag = 'input window, operand 0']
    #allocation3 [shape = 'u8[8192]{0}', space=vmem, size = 0x2000, scoped, tag = 'output window, operand 0']
    loop: start=0, step=1, limit=4
    $region2: #{ext_vq_forward.1} parent=1 // loop_pre_header
      _
    $region3: #{ext_vq_forward.1} parent=1 // loop_header
      %s11 = sphi 0, %s15
      %p12 = scmp.ge.s32.totalorder %s11, 4
      %s18 = sphi 0, %s30
      %s19 = sphi 0, %s26
      %s20 = sphi 0, %s18
      %s21 = sphi 0, %s19
      %s22 = sphi 0, %s20
      %s23 = sphi 0, %s21
      %s35 = sphi 0, %s37
      %s38 = sphi 0, %s35
      %s39 = sphi 0, %s38
      %s55 = sphi 0, %s39
      %s59 = sphi 0, %s59
      %s61 = sphi 0, %s59
      %s62 = sphi 0, %s61
      %s76 = sphi 0, %s62
      %s80 = sphi 0, %s80
      %s82 = sphi 0, %s80
      %s83 = sphi 0, %s82
      %s97 = sphi 0, %s83
      %s105 = sphi 0, %s107
      %s108 = sphi 0, %s105
      %s109 = sphi 0, %s108
      %s125 = sphi 0, %s109
      %s135 = sphi 0, %s137
      %s138 = sphi 0, %s135
      %s139 = sphi 0, %s138
      %s155 = sphi 0, %s139
    $region4: #{ext_vq_forward.1} parent=1 // loop_header_branch
      %14 = sbr.rel (%p12) target = $region8
    $region5: #{ext_vq_forward.1} parent=1 // loop_body
      %s16 = ssub.s32 %s11, 1
      %s17 = ssub.s32 %s11, 2
      %s24 = sadd.s32 1, %s19
      %p25 = scmp.ge.s32.totalorder %s24, 2
      %s26 = scalar_select %p25, 0, %s24
      %s27 = sadd.s32 1, %s18
      %s28 = scalar_select %p25, %s27, %s18
      %p29 = scmp.ge.s32.totalorder %s28, 1
      %s30 = scalar_select %p29, 0, %s28
      %s31 = ssub.s32 %s18, %s30
      %s32 = ssub.s32 %s19, %s26
      %s33 = sor.u32 %s31, %s32
      %p34 = scmp.eq.s32.totalorder %s33, 0
      %s36 = sadd.s32 %s35, 1
      %s37 = scalar_select %p34, %s35, %s36
      %p40 = pneg %p34
      %p41 = scmp.eq.s32.totalorder %s11, 1
      %p42 = por %p40, %p41
      %p43 = scmp.ne.s32.totalorder %s35, %s38
      %p44 = scmp.eq.s32.totalorder %s11, 0
      %p45 = por %p43, %p44
      %p46 = scmp.ne.s32.totalorder %s35, %s38
      %p47 = scmp.eq.s32.totalorder %s16, 1
      %p48 = por %p46, %p47
      %p49 = scmp.ne.s32.totalorder %s38, %s39
      %p50 = scmp.eq.s32.totalorder %s16, 0
      %p51 = por %p49, %p50
      %p52 = scmp.ne.s32.totalorder %s38, %s39
      %p53 = scmp.eq.s32.totalorder %s17, 1
      %p54 = por %p52, %p53
      %p56 = scmp.ne.s32.totalorder %s39, %s55
      %p57 = scmp.eq.s32.totalorder %s17, 0
      %p58 = por %p56, %p57
      %s60 = sadd.s32 %s59, 1
      %p63 = scmp.eq.s32.totalorder %s11, 1
      %p64 = scmp.ne.s32.totalorder %s59, %s61
      %p65 = scmp.eq.s32.totalorder %s11, 0
      %p66 = por %p64, %p65
      %p67 = scmp.ne.s32.totalorder %s59, %s61
      %p68 = scmp.eq.s32.totalorder %s16, 1
      %p69 = por %p67, %p68
      %p70 = scmp.ne.s32.totalorder %s61, %s62
      %p71 = scmp.eq.s32.totalorder %s16, 0
      %p72 = por %p70, %p71
      %p73 = scmp.ne.s32.totalorder %s61, %s62
      %p74 = scmp.eq.s32.totalorder %s17, 1
      %p75 = por %p73, %p74
      %p77 = scmp.ne.s32.totalorder %s62, %s76
      %p78 = scmp.eq.s32.totalorder %s17, 0
      %p79 = por %p77, %p78
      %s81 = sadd.s32 %s80, 1
      %p84 = scmp.eq.s32.totalorder %s11, 1
      %p85 = scmp.ne.s32.totalorder %s80, %s82
      %p86 = scmp.eq.s32.totalorder %s11, 0
      %p87 = por %p85, %p86
      %p88 = scmp.ne.s32.totalorder %s80, %s82
      %p89 = scmp.eq.s32.totalorder %s16, 1
      %p90 = por %p88, %p89
      %p91 = scmp.ne.s32.totalorder %s82, %s83
      %p92 = scmp.eq.s32.totalorder %s16, 0
      %p93 = por %p91, %p92
      %p94 = scmp.ne.s32.totalorder %s82, %s83
      %p95 = scmp.eq.s32.totalorder %s17, 1
      %p96 = por %p94, %p95
      %p98 = scmp.ne.s32.totalorder %s83, %s97
      %p99 = scmp.eq.s32.totalorder %s17, 0
      %p100 = por %p98, %p99
      %s101 = ssub.s32 %s18, %s30
      %s102 = ssub.s32 %s19, %s26
      %s103 = sor.u32 %s101, %s102
      %p104 = scmp.eq.s32.totalorder %s103, 0
      %s106 = sadd.s32 %s105, 1
      %s107 = scalar_select %p104, %s105, %s106
      %p110 = pneg %p104
      %p111 = scmp.eq.s32.totalorder %s11, 1
      %p112 = por %p110, %p111
      %p113 = scmp.ne.s32.totalorder %s105, %s108
      %p114 = scmp.eq.s32.totalorder %s11, 0
      %p115 = por %p113, %p114
      %p116 = scmp.ne.s32.totalorder %s105, %s108
      %p117 = scmp.eq.s32.totalorder %s16, 1
      %p118 = por %p116, %p117
      %p119 = scmp.ne.s32.totalorder %s108, %s109
      %p120 = scmp.eq.s32.totalorder %s16, 0
      %p121 = por %p119, %p120
      %p122 = scmp.ne.s32.totalorder %s108, %s109
      %p123 = scmp.eq.s32.totalorder %s17, 1
      %p124 = por %p122, %p123
      %p126 = scmp.ne.s32.totalorder %s109, %s125
      %p127 = scmp.eq.s32.totalorder %s17, 0
      %p128 = por %p126, %p127
      %s129 = smul.u32 %s18, 2
      %s130 = sadd.s32 %s129, %s19
      %s131 = smul.u32 %s30, 2
      %s132 = sadd.s32 %s131, %s26
      %s133 = ssub.s32 %s130, %s132
      %p134 = scmp.eq.s32.totalorder %s133, 0
      %s136 = sadd.s32 %s135, 1
      %s137 = scalar_select %p134, %s135, %s136
      %p140 = pneg %p134
      %p141 = scmp.eq.s32.totalorder %s11, 1
      %p142 = por %p140, %p141
      %p143 = scmp.ne.s32.totalorder %s135, %s138
      %p144 = scmp.eq.s32.totalorder %s11, 0
      %p145 = por %p143, %p144
      %p146 = scmp.ne.s32.totalorder %s135, %s138
      %p147 = scmp.eq.s32.totalorder %s16, 1
      %p148 = por %p146, %p147
      %p149 = scmp.ne.s32.totalorder %s138, %s139
      %p150 = scmp.eq.s32.totalorder %s16, 0
      %p151 = por %p149, %p150
      %p152 = scmp.ne.s32.totalorder %s138, %s139
      %p153 = scmp.eq.s32.totalorder %s17, 1
      %p154 = por %p152, %p153
      %p156 = scmp.ne.s32.totalorder %s139, %s155
      %p157 = scmp.eq.s32.totalorder %s17, 0
      %p158 = por %p156, %p157
      %p159 = scmp.le.s32.totalorder 1, %s11
      %p160 = scmp.lt.s32.totalorder %s11, 3
      %p161 = pnand %p159, %p160
      %p162 = pneg %p161
      // Predicated region
      $region9: #{ext_vq_forward.1} parent=5 // pred_check
        _
      $region10: #{ext_vq_forward.1} parent=5 // pred_check_branch
        %164 = sbr.rel (%p161) target = $region12
      $region11: #{ext_vq_forward.1} parent=5 // pred_region
        %s165 = ssub.s32 %s11, 1
        // Predicated region
        $region13: #{ext_vq_forward.1} parent=11 // pred_check
          %p166 = pneg %p72
        $region14: #{ext_vq_forward.1} parent=11 // pred_check_branch
          %168 = sbr.rel (%p166) target = $region16
        $region15: #{ext_vq_forward.1} parent=11 // pred_region
          _
        $region16: #{ext_vq_forward.1} parent=11 // pred_fallthru
          _
        // Predicated region
        $region17: #{ext_vq_forward.1} parent=11 // pred_check
          %p169 = pneg %p93
        $region18: #{ext_vq_forward.1} parent=11 // pred_check_branch
          %171 = sbr.rel (%p169) target = $region20
        $region19: #{ext_vq_forward.1} parent=11 // pred_region
          _
        $region20: #{ext_vq_forward.1} parent=11 // pred_fallthru
          _
      $region12: #{ext_vq_forward.1} parent=5 // pred_fallthru
        _
      %p172 = scmp.lt.s32.totalorder %s11, 2
      // Predicated region
      $region21: #{ext_vq_forward.1} parent=5 // pred_check
        %p173 = pneg %p172
      $region22: #{ext_vq_forward.1} parent=5 // pred_check_branch
        %175 = sbr.rel (%p173) target = $region24
      $region23: #{ext_vq_forward.1} parent=5 // pred_region
        // Predicated region
        $region25: #{ext_vq_forward.1} parent=23 // pred_check
          %p176 = pneg %p45
        $region26: #{ext_vq_forward.1} parent=23 // pred_check_branch
          %178 = sbr.rel (%p176) target = $region28
        $region27: #{ext_vq_forward.1} parent=23 // pred_region
          %s179 = sand.u32 %s35, 1
          %s180 = sand.u32 %s35, 1
          %s181 = smul.addr %s180, 8
          %s182 = scalar_lea.vmem [#allocation2], %s181
          %s183 = smul.u32 2, %s18
          %s184 = smul.addr %s183, 2
          %s185 = sadd.s32 %s19, %s184
          %s186 = smul.addr %s185, 4
          %s187 = scalar_lea.vmem %s0, %s186
          // Predicated region
          $region29: #{ext_vq_forward.1} parent=27 // pred_check
            _
          $region30: #{ext_vq_forward.1} parent=27 // pred_check_branch
            %189 = sbr.rel (0) target = $region32
          $region31: #{ext_vq_forward.1} parent=27 // pred_region
            // Predicated region
            $region33: #{ext_vq_forward.1} parent=31 // pred_check
              _
            $region34: #{ext_vq_forward.1} parent=31 // pred_check_branch
              %191 = sbr.rel target = $region36
            $region35: #{ext_vq_forward.1} parent=31 // pred_region
              // Predicated region
              $region48: #{ext_vq_forward.1} parent=35 // pred_check
                _
              $region49: #{ext_vq_forward.1} parent=35 // pred_check_branch
                %208 = sbr.rel (0) target = $region51
              $region50: #{ext_vq_forward.1} parent=35 // pred_region
                loop: start=0, step=1, limit=1
                $region52: #{ext_vq_forward.1} parent=50 // loop_pre_header
                  _
                $region53: #{ext_vq_forward.1} parent=50 // loop_header
                  %s210 = sphi 0, %s214
                  %p211 = scmp.ge.s32.totalorder %s210, 1
                  %s215 = sphi %s187, %s187
                  %s216 = sphi %s182, %s182
                $region54: #{ext_vq_forward.1} parent=50 // loop_header_branch
                  %213 = sbr.rel (%p211) target = $region58
                $region55: #{ext_vq_forward.1} parent=50 // loop_body
                  _
                $region56: #{ext_vq_forward.1} parent=50 // loop_footer
                  %s214 = sadd.s32 1, %s210
                $region57: #{ext_vq_forward.1} parent=50 // loop_footer_branch
                  %209 = sbr.rel target = $region53
                $region58: #{ext_vq_forward.1} parent=50 // loop_exit
                  _
                loop: start=0, step=1, limit=1
                $region59: #{ext_vq_forward.1} parent=50 // loop_pre_header
                  _
                $region60: #{ext_vq_forward.1} parent=50 // loop_header
                  %s219 = sphi 0, %s223
                  %p220 = scmp.ge.s32.totalorder %s219, 1
                  %s224 = sphi %s187, %s187
                  %s225 = sphi %s182, %s182
                $region61: #{ext_vq_forward.1} parent=50 // loop_header_branch
                  %222 = sbr.rel (%p220) target = $region65
                $region62: #{ext_vq_forward.1} parent=50 // loop_body
                  %v226 = vld [vmem:[%s224] sm:$0xf]
                  %227 = vst [vmem:[%s225] sm:$0xf] %v226
                  %v228 = vld [vmem:[%s224 + $0x8] sm:$0xf]
                  %229 = vst [vmem:[%s225 + $0x4] sm:$0xf] %v228
                $region63: #{ext_vq_forward.1} parent=50 // loop_footer
                  %s223 = sadd.s32 1, %s219
                $region64: #{ext_vq_forward.1} parent=50 // loop_footer_branch
                  %218 = sbr.rel target = $region60
                $region65: #{ext_vq_forward.1} parent=50 // loop_exit
                  _
              $region51: #{ext_vq_forward.1} parent=35 // pred_fallthru
                _
            $region36: #{ext_vq_forward.1} parent=31 // pred_fallthru
              _
            // Predicated region
            $region37: #{ext_vq_forward.1} parent=31 // pred_check
              _
            $region38: #{ext_vq_forward.1} parent=31 // pred_check_branch
              %193 = sbr.rel (0) target = $region40
            $region39: #{ext_vq_forward.1} parent=31 // pred_region
              loop: start=0, step=1, limit=1
              $region41: #{ext_vq_forward.1} parent=39 // loop_pre_header
                _
              $region42: #{ext_vq_forward.1} parent=39 // loop_header
                %s196 = sphi 0, %s200
                %p197 = scmp.ge.s32.totalorder %s196, 1
                %s201 = sphi %s187, %s187
                %s202 = sphi %s182, %s182
              $region43: #{ext_vq_forward.1} parent=39 // loop_header_branch
                %199 = sbr.rel (%p197) target = $region47
              $region44: #{ext_vq_forward.1} parent=39 // loop_body
                %v203 = vld [vmem:[%s201] sm:$0xf]
                %204 = vst [vmem:[%s202] sm:$0xf] %v203
                %v205 = vld [vmem:[%s201 + $0x8] sm:$0xf]
                %206 = vst [vmem:[%s202 + $0x4] sm:$0xf] %v205
              $region45: #{ext_vq_forward.1} parent=39 // loop_footer
                %s200 = sadd.s32 1, %s196
              $region46: #{ext_vq_forward.1} parent=39 // loop_footer_branch
                %195 = sbr.rel target = $region42
              $region47: #{ext_vq_forward.1} parent=39 // loop_exit
                _
            $region40: #{ext_vq_forward.1} parent=31 // pred_fallthru
              _
          $region32: #{ext_vq_forward.1} parent=27 // pred_fallthru
            _
          %230 = vnop
        $region28: #{ext_vq_forward.1} parent=23 // pred_fallthru
          _
      $region24: #{ext_vq_forward.1} parent=5 // pred_fallthru
        _
      %p231 = scmp.le.s32.totalorder 1, %s11
      %p232 = scmp.lt.s32.totalorder %s11, 3
      %p233 = pnand %p231, %p232
      %p234 = pneg %p233
      // Predicated region
      $region66: #{ext_vq_forward.1} parent=5 // pred_check
        _
      $region67: #{ext_vq_forward.1} parent=5 // pred_check_branch
        %236 = sbr.rel (%p233) target = $region69
      $region68: #{ext_vq_forward.1} parent=5 // pred_region
        %s237 = ssub.s32 %s11, 1
        %s238 = sand.u32 %s38, 1
        %s239 = sand.u32 %s38, 1
        %s240 = smul.addr %s239, 8
        %s241 = scalar_lea.vmem [#allocation2], %s240
        // Predicated region
        $region70: #{ext_vq_forward.1} parent=68 // pred_check
          %p242 = pneg %p51
        $region71: #{ext_vq_forward.1} parent=68 // pred_check_branch
          %244 = sbr.rel (%p242) target = $region73
        $region72: #{ext_vq_forward.1} parent=68 // pred_region
          _
        $region73: #{ext_vq_forward.1} parent=68 // pred_fallthru
          _
        %s245 = sand.u32 %s38, 1
        %s246 = sand.u32 %s38, 1
        %s247 = smul.addr %s246, 8
        %s248 = scalar_lea.vmem [#allocation2], %s247
        %p249 = pneg %p51
        %p250 = pneg %p48
        %p251 = pneg %p72
        %p252 = pneg %p69
        %p253 = pneg %p93
        %p254 = pneg %p90
        %p255 = pneg %p121
        %p256 = pneg %p118
        %s257 = sand.u32 %s108, 1
        %s258 = sand.u32 %s108, 1
        %s259 = smul.addr %s258, 8
        %s260 = scalar_lea.vmem [#allocation3], %s259
        %p261 = pneg %p151
        %p262 = pneg %p148
        %s263 = smul.u32 %s20, 2
        %s264 = sadd.s32 %s263, %s21
        %p265 = scmp.lt.s32.totalorder %s264, 1
        %s266 = scalar_select %p265, %s264, 1
        %s267 = scalar_lea.vmem %s4, %s266
        %s268 = smul.u32 2, %s20
        %s269 = smul.u32 2, %s20
        %s270 = smul.u32 %s20, 2
        %s271 = sadd.s32 %s270, %s21
        %p272 = scmp.lt.s32.totalorder %s271, 1
        %s273 = scalar_select %p272, %s271, 1
        %s274 = scalar_lea.vmem %s4, %s273
        %s275 = smul.u32 %s20, 2
        %s276 = sadd.s32 %s275, %s21
        %v277 = vld [vmem:[%s1] sm:$0xff]
        %v278 = vld [vmem:[%s1 + $0x8] sm:$0xff]
        %v279 = vld [vmem:[%s2] sm:$0xff]
        %v280 = vld [vmem:[%s2 + $0x8] sm:$0xff]
        %v281 = vlaneseq
        %v282 = vshrl.u32 %v281, 7
        %v283 = vadd.s32 %v282, 8
        %v284 = vld [vmem:[%s241] sm:$0xf]
        %vm285 = vcmask 31744
        %v287 = vsel %vm285, %v277, 0
        %v290 = vsel %vm285, %v278, 0
        %vm292 = vcmask 1043456
        %v294 = vsel %vm292, %v284, 0
        %296 = vmatprep.subr.mxu0 0.0
        %297 = vmatpush1.msra.mxu0 %v294
        %298 = vmatprep.subr.mxu0 0.0
        %299 = vmatpush1.msra.mxu0 0.0
        %300 = vmatprep.subr.mxu0 0.0
        %301 = vmatpush1.msra.mxu0 0.0
        %302 = vmatprep.subr.mxu0 0.0
        %303 = vmatpush1.msra.mxu0 0.0
        %304 = vmatprep.subr.mxu0 0.0
        %305 = vmatpush1.msra.mxu0 0.0
        %306 = vmatprep.subr.mxu0 0.0
        %307 = vmatpush1.msra.mxu0 0.0
        %308 = vmatprep.subr.mxu0 0.0
        %309 = vmatpush1.msra.mxu0 0.0
        %310 = vmatprep.subr.mxu0 0.0
        %311 = vmatpush1.msra.mxu0 0.0
        %312 = vmatprep.subr.mxu0 0.0
        %313 = vmatpush1.msra.mxu0 0.0
        %314 = vmatprep.subr.mxu0 0.0
        %315 = vmatpush1.msra.mxu0 0.0
        %316 = vmatprep.subr.mxu0 0.0
        %317 = vmatpush1.msra.mxu0 0.0
        %318 = vmatprep.subr.mxu0 0.0
        %319 = vmatpush1.msra.mxu0 0.0
        %320 = vmatprep.subr.mxu0 0.0
        %321 = vmatpush1.msra.mxu0 0.0
        %322 = vmatprep.subr.mxu0 0.0
        %323 = vmatpush1.msra.mxu0 0.0
        %324 = vmatprep.subr.mxu0 0.0
        %325 = vmatpush1.msra.mxu0 0.0
        %326 = vmatprep.subr.mxu0 0.0
        %327 = vmatpush1.msra.mxu0 0.0
        %328 = vmatprep.subr.mxu0 0.0
        %329 = vmatpush1.msra.mxu0 0.0
        %330 = vmatprep.subr.mxu0 0.0
        %331 = vmatpush1.msra.mxu0 0.0
        %332 = vmatprep.subr.mxu0 0.0
        %333 = vmatpush1.msra.mxu0 0.0
        %334 = vmatprep.subr.mxu0 0.0
        %335 = vmatpush1.msra.mxu0 0.0
        %336 = vmatprep.subr.mxu0 0.0
        %337 = vmatpush1.msra.mxu0 0.0
        %338 = vmatprep.subr.mxu0 0.0
        %339 = vmatpush1.msra.mxu0 0.0
        %340 = vmatprep.subr.mxu0 0.0
        %341 = vmatpush1.msra.mxu0 0.0
        %342 = vmatprep.subr.mxu0 0.0
        %343 = vmatpush1.msra.mxu0 0.0
        %344 = vmatprep.subr.mxu0 0.0
        %345 = vmatpush1.msra.mxu0 0.0
        %346 = vmatprep.subr.mxu0 0.0
        %347 = vmatpush1.msra.mxu0 0.0
        %348 = vmatprep.subr.mxu0 0.0
        %349 = vmatpush1.msra.mxu0 0.0
        %350 = vmatprep.subr.mxu0 0.0
        %351 = vmatpush1.msra.mxu0 0.0
        %352 = vmatprep.subr.mxu0 0.0
        %353 = vmatpush1.msra.mxu0 0.0
        %354 = vmatprep.subr.mxu0 0.0
        %355 = vmatpush1.msra.mxu0 0.0
        %356 = vmatprep.subr.mxu0 0.0
        %357 = vmatpush1.msra.mxu0 0.0
        %358 = vmatprep.subr.mxu0 0.0
        %359 = vmatpush1.msra.mxu0 0.0
        %360 = vmatprep.mubr.f32.mxu0 0.0
        %361 = vmatmul.mubr.f32.gmra.mrb[0].mxu0 %v287
        %v362 = vpop.f32.mrb[0].mxu0
        %v363 = vadd.f32 0.0, %v362
        %v364 = vpop.f32.mrb[0].mxu0
        %365 = vmatprep.mubr.f32.mxu0 0.0
        %366 = vmatmul.mubr.f32.gmra.mrb[0].mxu0 %v290
        %v367 = vpop.f32.mrb[0].mxu0
        %v368 = vadd.f32 0.0, %v367
        %v369 = vpop.f32.mrb[0].mxu0
        %370 = vdwg.mxu0
        %372 = vset.pattern.permute.xlu0 0
        %373 = vperm.xlu0 %372, %v279
        %v374 = vpop.permute.xlu0 %373
        %377 = vset.pattern.permute.xlu0 0
        %378 = vperm.xlu0 %377, %v280
        %v379 = vpop.permute.xlu0 %378
        %v381 = vsub.f32 %v374, %v363
        %v382 = vsub.f32 %v379, %v368
        %v383 = vmin.f32 %v381, %v382
        %v384 = vrot.slane %v383, 4
        %v385 = vmin.f32 %v383, %v384
        %v386 = vrot.slane %v385, 2
        %v387 = vmin.f32 %v385, %v386
        %v388 = vrot.slane %v387, 1
        %v389 = vmin.f32 %v387, %v388
        %vm390 = vcmp.eq.f32.partialorder %v381, %v389
        %vm391 = vcmp.eq.f32.partialorder %v382, %v389
        %v392 = vsel %vm390, %v282, 16
        %v393 = vsel %vm391, %v283, 16
        %vm394 = vcmp.lt.s32.totalorder %v392, %v393
        %v395 = vsel %vm394, %v392, %v393
        %v396 = vrot.slane %v395, 4
        %vm397 = vcmp.lt.s32.totalorder %v395, %v396
        %v398 = vsel %vm397, %v395, %v396
        %v399 = vrot.slane %v398, 2
        %vm400 = vcmp.lt.s32.totalorder %v398, %v399
        %v401 = vsel %vm400, %v398, %v399
        %v402 = vrot.slane %v401, 1
        %vm403 = vcmp.lt.s32.totalorder %v401, %v402
        %v404 = vsel %vm403, %v401, %v402
        %vm405 = vcmp.eq.s32.totalorder %v282, %v404
        %vm406 = vcmp.eq.s32.totalorder %v283, %v404
        %v407 = vsel %vm405, 1, 0
        %v408 = vsel %vm406, 1, 0
        %v409 = vcvt.s32.f32 %v407
        %v410 = vcvt.s32.f32 %v408
        %411 = vxpose.xlu0.b32.start [1/16] %v277, 128
        %412 = vxpose.xlu0.b32.cont [2/16] %v278, 128
        %413 = vxpose.xlu0.b32.cont [3/16] 0.0, 128
        %414 = vxpose.xlu0.b32.cont [4/16] 0.0, 128
        %415 = vxpose.xlu0.b32.cont [5/16] 0.0, 128
        %416 = vxpose.xlu0.b32.cont [6/16] 0.0, 128
        %417 = vxpose.xlu0.b32.cont [7/16] 0.0, 128
        %418 = vxpose.xlu0.b32.cont [8/16] 0.0, 128
        %419 = vxpose.xlu0.b32.cont [9/16] 0.0, 128
        %420 = vxpose.xlu0.b32.cont [10/16] 0.0, 128
        %421 = vxpose.xlu0.b32.cont [11/16] 0.0, 128
        %422 = vxpose.xlu0.b32.cont [12/16] 0.0, 128
        %423 = vxpose.xlu0.b32.cont [13/16] 0.0, 128
        %424 = vxpose.xlu0.b32.cont [14/16] 0.0, 128
        %425 = vxpose.xlu0.b32.cont [15/16] 0.0, 128
        %426 = vxpose.xlu0.b32.end [16/16] 0.0, 128
        %v427 = vpop.trf.xlu0
        %v428 = vpop.trf.xlu0
        %v429 = vpop.trf.xlu0
        %v430 = vpop.trf.xlu0
        %v431 = vpop.trf.xlu0
        %v432 = vpop.trf.xlu0
        %v433 = vpop.trf.xlu0
        %v434 = vpop.trf.xlu0
        %v435 = vpop.trf.xlu0
        %v436 = vpop.trf.xlu0
        %v437 = vpop.trf.xlu0
        %v438 = vpop.trf.xlu0
        %v439 = vpop.trf.xlu0
        %v440 = vpop.trf.xlu0
        %v441 = vpop.trf.xlu0
        %v442 = vpop.trf.xlu0
        %vm443 = vcmask 130048
        %v445 = vsel %vm443, %v427, 0
        %447 = vmatprep.subr.mxu0 0.0
        %448 = vmatpush1.msra.mxu0 %v409
        %449 = vmatprep.subr.mxu0 0.0
        %450 = vmatpush1.msra.mxu0 %v410
        %451 = vmatprep.subr.mxu0 0.0
        %452 = vmatpush1.msra.mxu0 0.0
        %453 = vmatprep.subr.mxu0 0.0
        %454 = vmatpush1.msra.mxu0 0.0
        %455 = vmatprep.subr.mxu0 0.0
        %456 = vmatpush1.msra.mxu0 0.0
        %457 = vmatprep.subr.mxu0 0.0
        %458 = vmatpush1.msra.mxu0 0.0
        %459 = vmatprep.subr.mxu0 0.0
        %460 = vmatpush1.msra.mxu0 0.0
        %461 = vmatprep.subr.mxu0 0.0
        %462 = vmatpush1.msra.mxu0 0.0
        %463 = vmatprep.subr.mxu0 0.0
        %464 = vmatpush1.msra.mxu0 0.0
        %465 = vmatprep.subr.mxu0 0.0
        %466 = vmatpush1.msra.mxu0 0.0
        %467 = vmatprep.subr.mxu0 0.0
        %468 = vmatpush1.msra.mxu0 0.0
        %469 = vmatprep.subr.mxu0 0.0
        %470 = vmatpush1.msra.mxu0 0.0
        %471 = vmatprep.subr.mxu0 0.0
        %472 = vmatpush1.msra.mxu0 0.0
        %473 = vmatprep.subr.mxu0 0.0
        %474 = vmatpush1.msra.mxu0 0.0
        %475 = vmatprep.subr.mxu0 0.0
        %476 = vmatpush1.msra.mxu0 0.0
        %477 = vmatprep.subr.mxu0 0.0
        %478 = vmatpush1.msra.mxu0 0.0
        %479 = vmatprep.subr.mxu0 0.0
        %480 = vmatpush1.msra.mxu0 0.0
        %481 = vmatprep.subr.mxu0 0.0
        %482 = vmatpush1.msra.mxu0 0.0
        %483 = vmatprep.subr.mxu0 0.0
        %484 = vmatpush1.msra.mxu0 0.0
        %485 = vmatprep.subr.mxu0 0.0
        %486 = vmatpush1.msra.mxu0 0.0
        %487 = vmatprep.subr.mxu0 0.0
        %488 = vmatpush1.msra.mxu0 0.0
        %489 = vmatprep.subr.mxu0 0.0
        %490 = vmatpush1.msra.mxu0 0.0
        %491 = vmatprep.subr.mxu0 0.0
        %492 = vmatpush1.msra.mxu0 0.0
        %493 = vmatprep.subr.mxu0 0.0
        %494 = vmatpush1.msra.mxu0 0.0
        %495 = vmatprep.subr.mxu0 0.0
        %496 = vmatpush1.msra.mxu0 0.0
        %497 = vmatprep.subr.mxu0 0.0
        %498 = vmatpush1.msra.mxu0 0.0
        %499 = vmatprep.subr.mxu0 0.0
        %500 = vmatpush1.msra.mxu0 0.0
        %501 = vmatprep.subr.mxu0 0.0
        %502 = vmatpush1.msra.mxu0 0.0
        %503 = vmatprep.subr.mxu0 0.0
        %504 = vmatpush1.msra.mxu0 0.0
        %505 = vmatprep.subr.mxu0 0.0
        %506 = vmatpush1.msra.mxu0 0.0
        %507 = vmatprep.subr.mxu0 0.0
        %508 = vmatpush1.msra.mxu0 0.0
        %509 = vmatprep.subr.mxu0 0.0
        %510 = vmatpush1.msra.mxu0 0.0
        %511 = vmatprep.mubr.f32.mxu0 0.0
        %512 = vmatmul.mubr.f32.gmra.mrb[0].mxu0 %v445
        %v513 = vpop.f32.mrb[0].mxu0
        %v514 = vadd.f32 0.0, %v513
        %v515 = vpop.f32.mrb[0].mxu0
        %516 = vdwg.mxu0
        %517 = vst [vmem:[%s260] sm:$0xf] %v514
        %v518 = vsub.f32 %v514, %v284
        %v519 = vmul.f32 %v518, %v518
        %v520 = vsel %vm292, %v519, 0.0
        %v521 = vrot.slane %v520, 4
        %v522 = vadd.f32 %v520, %v521
        %v523 = vrot.slane %v522, 2
        %v524 = vadd.f32 %v522, %v523
        %v525 = vrot.slane %v524, 1
        %v526 = vadd.f32 %v524, %v525
        %527 = vmatprep.subr.mxu0 0.0
        %528 = vmatpush1.xpose.msra.mxu0 %v409
        %529 = vmatprep.subr.mxu0 0.0
        %530 = vmatpush1.xpose.msra.mxu0 %v410
        %531 = vmatprep.subr.mxu0 0.0
        %532 = vmatpush1.xpose.msra.mxu0 0.0
        %533 = vmatprep.subr.mxu0 0.0
        %534 = vmatpush1.xpose.msra.mxu0 0.0
        %535 = vmatprep.subr.mxu0 0.0
        %536 = vmatpush1.xpose.msra.mxu0 0.0
        %537 = vmatprep.subr.mxu0 0.0
        %538 = vmatpush1.xpose.msra.mxu0 0.0
        %539 = vmatprep.subr.mxu0 0.0
        %540 = vmatpush1.xpose.msra.mxu0 0.0
        %541 = vmatprep.subr.mxu0 0.0
        %542 = vmatpush1.xpose.msra.mxu0 0.0
        %543 = vmatprep.subr.mxu0 0.0
        %544 = vmatpush1.xpose.msra.mxu0 0.0
        %545 = vmatprep.subr.mxu0 0.0
        %546 = vmatpush1.xpose.msra.mxu0 0.0
        %547 = vmatprep.subr.mxu0 0.0
        %548 = vmatpush1.xpose.msra.mxu0 0.0
        %549 = vmatprep.subr.mxu0 0.0
        %550 = vmatpush1.xpose.msra.mxu0 0.0
        %551 = vmatprep.subr.mxu0 0.0
        %552 = vmatpush1.xpose.msra.mxu0 0.0
        %553 = vmatprep.subr.mxu0 0.0
        %554 = vmatpush1.xpose.msra.mxu0 0.0
        %555 = vmatprep.subr.mxu0 0.0
        %556 = vmatpush1.xpose.msra.mxu0 0.0
        %557 = vmatprep.subr.mxu0 0.0
        %558 = vmatpush1.xpose.msra.mxu0 0.0
        %559 = vmatprep.subr.mxu0 0.0
        %560 = vmatpush1.xpose.msra.mxu0 0.0
        %561 = vmatprep.subr.mxu0 0.0
        %562 = vmatpush1.xpose.msra.mxu0 0.0
        %563 = vmatprep.subr.mxu0 0.0
        %564 = vmatpush1.xpose.msra.mxu0 0.0
        %565 = vmatprep.subr.mxu0 0.0
        %566 = vmatpush1.xpose.msra.mxu0 0.0
        %567 = vmatprep.subr.mxu0 0.0
        %568 = vmatpush1.xpose.msra.mxu0 0.0
        %569 = vmatprep.subr.mxu0 0.0
        %570 = vmatpush1.xpose.msra.mxu0 0.0
        %571 = vmatprep.subr.mxu0 0.0
        %572 = vmatpush1.xpose.msra.mxu0 0.0
        %573 = vmatprep.subr.mxu0 0.0
        %574 = vmatpush1.xpose.msra.mxu0 0.0
        %575 = vmatprep.subr.mxu0 0.0
        %576 = vmatpush1.xpose.msra.mxu0 0.0
        %577 = vmatprep.subr.mxu0 0.0
        %578 = vmatpush1.xpose.msra.mxu0 0.0
        %579 = vmatprep.subr.mxu0 0.0
        %580 = vmatpush1.xpose.msra.mxu0 0.0
        %581 = vmatprep.subr.mxu0 0.0
        %582 = vmatpush1.xpose.msra.mxu0 0.0
        %583 = vmatprep.subr.mxu0 0.0
        %584 = vmatpush1.xpose.msra.mxu0 0.0
        %585 = vmatprep.subr.mxu0 0.0
        %586 = vmatpush1.xpose.msra.mxu0 0.0
        %587 = vmatprep.subr.mxu0 0.0
        %588 = vmatpush1.xpose.msra.mxu0 0.0
        %589 = vmatprep.subr.mxu0 0.0
        %590 = vmatpush1.xpose.msra.mxu0 0.0
        %591 = vmatprep.mubr.f32.mxu0 0.0
        %592 = vmatmul.mubr.f32.gmra.mrb[0].mxu0 1.0
        %v593 = vpop.f32.mrb[0].mxu0
        %v594 = vadd.f32 0.0, %v593
        %v595 = vpop.f32.mrb[0].mxu0
        %596 = vdwg.mxu0
        %597 = vadd.xlane.f32.xlu0 %v526
        %v598 = vpop.xlane.xlu0 %597
        %v599 = vsel %vm443, %v594, %v598
        %v600 = vadd.f32 %v599, 0.0
        %s601 = scalar_lea.vmem %s241, 4 [#allocation2]
        %v602 = vld [vmem:[%s601] sm:$0xf]
        %v604 = vsel %vm292, %v602, 0
        %606 = vmatprep.subr.mxu0 0.0
        %607 = vmatpush1.msra.mxu0 %v604
        %608 = vmatprep.subr.mxu0 0.0
        %609 = vmatpush1.msra.mxu0 0.0
        %610 = vmatprep.subr.mxu0 0.0
        %611 = vmatpush1.msra.mxu0 0.0
        %612 = vmatprep.subr.mxu0 0.0
        %613 = vmatpush1.msra.mxu0 0.0
        %614 = vmatprep.subr.mxu0 0.0
        %615 = vmatpush1.msra.mxu0 0.0
        %616 = vmatprep.subr.mxu0 0.0
        %617 = vmatpush1.msra.mxu0 0.0
        %618 = vmatprep.subr.mxu0 0.0
        %619 = vmatpush1.msra.mxu0 0.0
        %620 = vmatprep.subr.mxu0 0.0
        %621 = vmatpush1.msra.mxu0 0.0
        %622 = vmatprep.subr.mxu0 0.0
        %623 = vmatpush1.msra.mxu0 0.0
        %624 = vmatprep.subr.mxu0 0.0
        %625 = vmatpush1.msra.mxu0 0.0
        %626 = vmatprep.subr.mxu0 0.0
        %627 = vmatpush1.msra.mxu0 0.0
        %628 = vmatprep.subr.mxu0 0.0
        %629 = vmatpush1.msra.mxu0 0.0
        %630 = vmatprep.subr.mxu0 0.0
        %631 = vmatpush1.msra.mxu0 0.0
        %632 = vmatprep.subr.mxu0 0.0
        %633 = vmatpush1.msra.mxu0 0.0
        %634 = vmatprep.subr.mxu0 0.0
        %635 = vmatpush1.msra.mxu0 0.0
        %636 = vmatprep.subr.mxu0 0.0
        %637 = vmatpush1.msra.mxu0 0.0
        %638 = vmatprep.subr.mxu0 0.0
        %639 = vmatpush1.msra.mxu0 0.0
        %640 = vmatprep.subr.mxu0 0.0
        %641 = vmatpush1.msra.mxu0 0.0
        %642 = vmatprep.subr.mxu0 0.0
        %643 = vmatpush1.msra.mxu0 0.0
        %644 = vmatprep.subr.mxu0 0.0
        %645 = vmatpush1.msra.mxu0 0.0
        %646 = vmatprep.subr.mxu0 0.0
        %647 = vmatpush1.msra.mxu0 0.0
        %648 = vmatprep.subr.mxu0 0.0
        %649 = vmatpush1.msra.mxu0 0.0
        %650 = vmatprep.subr.mxu0 0.0
        %651 = vmatpush1.msra.mxu0 0.0
        %652 = vmatprep.subr.mxu0 0.0
        %653 = vmatpush1.msra.mxu0 0.0
        %654 = vmatprep.subr.mxu0 0.0
        %655 = vmatpush1.msra.mxu0 0.0
        %656 = vmatprep.subr.mxu0 0.0
        %657 = vmatpush1.msra.mxu0 0.0
        %658 = vmatprep.subr.mxu0 0.0
        %659 = vmatpush1.msra.mxu0 0.0
        %660 = vmatprep.subr.mxu0 0.0
        %661 = vmatpush1.msra.mxu0 0.0
        %662 = vmatprep.subr.mxu0 0.0
        %663 = vmatpush1.msra.mxu0 0.0
        %664 = vmatprep.subr.mxu0 0.0
        %665 = vmatpush1.msra.mxu0 0.0
        %666 = vmatprep.subr.mxu0 0.0
        %667 = vmatpush1.msra.mxu0 0.0
        %668 = vmatprep.subr.mxu0 0.0
        %669 = vmatpush1.msra.mxu0 0.0
        %670 = vmatprep.mubr.f32.mxu0 0.0
        %671 = vmatmul.mubr.f32.gmra.mrb[0].mxu0 %v287
        %v672 = vpop.f32.mrb[0].mxu0
        %v673 = vadd.f32 0.0, %v672
        %v674 = vpop.f32.mrb[0].mxu0
        %675 = vmatprep.mubr.f32.mxu0 0.0
        %676 = vmatmul.mubr.f32.gmra.mrb[0].mxu0 %v290
        %v677 = vpop.f32.mrb[0].mxu0
        %v678 = vadd.f32 0.0, %v677
        %v679 = vpop.f32.mrb[0].mxu0
        %680 = vdwg.mxu0
        %v681 = vsub.f32 %v374, %v673
        %v682 = vsub.f32 %v379, %v678
        %v683 = vmin.f32 %v681, %v682
        %v684 = vrot.slane %v683, 4
        %v685 = vmin.f32 %v683, %v684
        %v686 = vrot.slane %v685, 2
        %v687 = vmin.f32 %v685, %v686
        %v688 = vrot.slane %v687, 1
        %v689 = vmin.f32 %v687, %v688
        %vm690 = vcmp.eq.f32.partialorder %v681, %v689
        %vm691 = vcmp.eq.f32.partialorder %v682, %v689
        %v692 = vsel %vm690, %v282, 16
        %v693 = vsel %vm691, %v283, 16
        %vm694 = vcmp.lt.s32.totalorder %v692, %v693
        %v695 = vsel %vm694, %v692, %v693
        %v696 = vrot.slane %v695, 4
        %vm697 = vcmp.lt.s32.totalorder %v695, %v696
        %v698 = vsel %vm697, %v695, %v696
        %v699 = vrot.slane %v698, 2
        %vm700 = vcmp.lt.s32.totalorder %v698, %v699
        %v701 = vsel %vm700, %v698, %v699
        %v702 = vrot.slane %v701, 1
        %vm703 = vcmp.lt.s32.totalorder %v701, %v702
        %v704 = vsel %vm703, %v701, %v702
        %vm705 = vcmp.eq.s32.totalorder %v282, %v704
        %vm706 = vcmp.eq.s32.totalorder %v283, %v704
        %v707 = vsel %vm705, 1, 0
        %v708 = vsel %vm706, 1, 0
        %v709 = vcvt.s32.f32 %v707
        %v710 = vcvt.s32.f32 %v708
        %711 = vmatprep.subr.mxu0 0.0
        %712 = vmatpush1.msra.mxu0 %v709
        %713 = vmatprep.subr.mxu0 0.0
        %714 = vmatpush1.msra.mxu0 %v710
        %715 = vmatprep.subr.mxu0 0.0
        %716 = vmatpush1.msra.mxu0 0.0
        %717 = vmatprep.subr.mxu0 0.0
        %718 = vmatpush1.msra.mxu0 0.0
        %719 = vmatprep.subr.mxu0 0.0
        %720 = vmatpush1.msra.mxu0 0.0
        %721 = vmatprep.subr.mxu0 0.0
        %722 = vmatpush1.msra.mxu0 0.0
        %723 = vmatprep.subr.mxu0 0.0
        %724 = vmatpush1.msra.mxu0 0.0
        %725 = vmatprep.subr.mxu0 0.0
        %726 = vmatpush1.msra.mxu0 0.0
        %727 = vmatprep.subr.mxu0 0.0
        %728 = vmatpush1.msra.mxu0 0.0
        %729 = vmatprep.subr.mxu0 0.0
        %730 = vmatpush1.msra.mxu0 0.0
        %731 = vmatprep.subr.mxu0 0.0
        %732 = vmatpush1.msra.mxu0 0.0
        %733 = vmatprep.subr.mxu0 0.0
        %734 = vmatpush1.msra.mxu0 0.0
        %735 = vmatprep.subr.mxu0 0.0
        %736 = vmatpush1.msra.mxu0 0.0
        %737 = vmatprep.subr.mxu0 0.0
        %738 = vmatpush1.msra.mxu0 0.0
        %739 = vmatprep.subr.mxu0 0.0
        %740 = vmatpush1.msra.mxu0 0.0
        %741 = vmatprep.subr.mxu0 0.0
        %742 = vmatpush1.msra.mxu0 0.0
        %743 = vmatprep.subr.mxu0 0.0
        %744 = vmatpush1.msra.mxu0 0.0
        %745 = vmatprep.subr.mxu0 0.0
        %746 = vmatpush1.msra.mxu0 0.0
        %747 = vmatprep.subr.mxu0 0.0
        %748 = vmatpush1.msra.mxu0 0.0
        %749 = vmatprep.subr.mxu0 0.0
        %750 = vmatpush1.msra.mxu0 0.0
        %751 = vmatprep.subr.mxu0 0.0
        %752 = vmatpush1.msra.mxu0 0.0
        %753 = vmatprep.subr.mxu0 0.0
        %754 = vmatpush1.msra.mxu0 0.0
        %755 = vmatprep.subr.mxu0 0.0
        %756 = vmatpush1.msra.mxu0 0.0
        %757 = vmatprep.subr.mxu0 0.0
        %758 = vmatpush1.msra.mxu0 0.0
        %759 = vmatprep.subr.mxu0 0.0
        %760 = vmatpush1.msra.mxu0 0.0
        %761 = vmatprep.subr.mxu0 0.0
        %762 = vmatpush1.msra.mxu0 0.0
        %763 = vmatprep.subr.mxu0 0.0
        %764 = vmatpush1.msra.mxu0 0.0
        %765 = vmatprep.subr.mxu0 0.0
        %766 = vmatpush1.msra.mxu0 0.0
        %767 = vmatprep.subr.mxu0 0.0
        %768 = vmatpush1.msra.mxu0 0.0
        %769 = vmatprep.subr.mxu0 0.0
        %770 = vmatpush1.msra.mxu0 0.0
        %771 = vmatprep.subr.mxu0 0.0
        %772 = vmatpush1.msra.mxu0 0.0
        %773 = vmatprep.subr.mxu0 0.0
        %774 = vmatpush1.msra.mxu0 0.0
        %775 = vmatprep.mubr.f32.mxu0 0.0
        %776 = vmatmul.mubr.f32.gmra.mrb[0].mxu0 %v445
        %v777 = vpop.f32.mrb[0].mxu0
        %v778 = vadd.f32 0.0, %v777
        %v779 = vpop.f32.mrb[0].mxu0
        %780 = vdwg.mxu0
        %s781 = scalar_lea.vmem %s260, 4 [#allocation3]
        %782 = vst [vmem:[%s781] sm:$0xf] %v778
        %v783 = vsub.f32 %v778, %v602
        %v784 = vmul.f32 %v783, %v783
        %v785 = vsel %vm292, %v784, 0.0
        %v786 = vrot.slane %v785, 4
        %v787 = vadd.f32 %v785, %v786
        %v788 = vrot.slane %v787, 2
        %v789 = vadd.f32 %v787, %v788
        %v790 = vrot.slane %v789, 1
        %v791 = vadd.f32 %v789, %v790
        %792 = vmatprep.subr.mxu0 0.0
        %793 = vmatpush1.xpose.msra.mxu0 %v709
        %794 = vmatprep.subr.mxu0 0.0
        %795 = vmatpush1.xpose.msra.mxu0 %v710
        %796 = vmatprep.subr.mxu0 0.0
        %797 = vmatpush1.xpose.msra.mxu0 0.0
        %798 = vmatprep.subr.mxu0 0.0
        %799 = vmatpush1.xpose.msra.mxu0 0.0
        %800 = vmatprep.subr.mxu0 0.0
        %801 = vmatpush1.xpose.msra.mxu0 0.0
        %802 = vmatprep.subr.mxu0 0.0
        %803 = vmatpush1.xpose.msra.mxu0 0.0
        %804 = vmatprep.subr.mxu0 0.0
        %805 = vmatpush1.xpose.msra.mxu0 0.0
        %806 = vmatprep.subr.mxu0 0.0
        %807 = vmatpush1.xpose.msra.mxu0 0.0
        %808 = vmatprep.subr.mxu0 0.0
        %809 = vmatpush1.xpose.msra.mxu0 0.0
        %810 = vmatprep.subr.mxu0 0.0
        %811 = vmatpush1.xpose.msra.mxu0 0.0
        %812 = vmatprep.subr.mxu0 0.0
        %813 = vmatpush1.xpose.msra.mxu0 0.0
        %814 = vmatprep.subr.mxu0 0.0
        %815 = vmatpush1.xpose.msra.mxu0 0.0
        %816 = vmatprep.subr.mxu0 0.0
        %817 = vmatpush1.xpose.msra.mxu0 0.0
        %818 = vmatprep.subr.mxu0 0.0
        %819 = vmatpush1.xpose.msra.mxu0 0.0
        %820 = vmatprep.subr.mxu0 0.0
        %821 = vmatpush1.xpose.msra.mxu0 0.0
        %822 = vmatprep.subr.mxu0 0.0
        %823 = vmatpush1.xpose.msra.mxu0 0.0
        %824 = vmatprep.subr.mxu0 0.0
        %825 = vmatpush1.xpose.msra.mxu0 0.0
        %826 = vmatprep.subr.mxu0 0.0
        %827 = vmatpush1.xpose.msra.mxu0 0.0
        %828 = vmatprep.subr.mxu0 0.0
        %829 = vmatpush1.xpose.msra.mxu0 0.0
        %830 = vmatprep.subr.mxu0 0.0
        %831 = vmatpush1.xpose.msra.mxu0 0.0
        %832 = vmatprep.subr.mxu0 0.0
        %833 = vmatpush1.xpose.msra.mxu0 0.0
        %834 = vmatprep.subr.mxu0 0.0
        %835 = vmatpush1.xpose.msra.mxu0 0.0
        %836 = vmatprep.subr.mxu0 0.0
        %837 = vmatpush1.xpose.msra.mxu0 0.0
        %838 = vmatprep.subr.mxu0 0.0
        %839 = vmatpush1.xpose.msra.mxu0 0.0
        %840 = vmatprep.subr.mxu0 0.0
        %841 = vmatpush1.xpose.msra.mxu0 0.0
        %842 = vmatprep.subr.mxu0 0.0
        %843 = vmatpush1.xpose.msra.mxu0 0.0
        %844 = vmatprep.subr.mxu0 0.0
        %845 = vmatpush1.xpose.msra.mxu0 0.0
        %846 = vmatprep.subr.mxu0 0.0
        %847 = vmatpush1.xpose.msra.mxu0 0.0
        %848 = vmatprep.subr.mxu0 0.0
        %849 = vmatpush1.xpose.msra.mxu0 0.0
        %850 = vmatprep.subr.mxu0 0.0
        %851 = vmatpush1.xpose.msra.mxu0 0.0
        %852 = vmatprep.subr.mxu0 0.0
        %853 = vmatpush1.xpose.msra.mxu0 0.0
        %854 = vmatprep.subr.mxu0 0.0
        %855 = vmatpush1.xpose.msra.mxu0 0.0
        %856 = vmatprep.mubr.f32.mxu0 0.0
        %857 = vmatmul.mubr.f32.gmra.mrb[0].mxu0 1.0
        %v858 = vpop.f32.mrb[0].mxu0
        %v859 = vadd.f32 0.0, %v858
        %v860 = vpop.f32.mrb[0].mxu0
        %861 = vdwg.mxu0
        %862 = vadd.xlane.f32.xlu0 %v791
        %v863 = vpop.xlane.xlu0 %862
        %v864 = vsel %vm443, %v859, %v863
        %v865 = vadd.f32 %v600, %v864
        %vm866 = vcmask 138240
        %v867 = vsel %vm866, %v865, 0.0
        %868 = vst [vmem:[%s274] sm:$0x1] %v867
        %s869 = sand.u32 %s108, 1
        %s870 = sand.u32 %s108, 1
        %s871 = smul.addr %s870, 8
        %s872 = scalar_lea.vmem [#allocation3], %s871
        %s873 = smul.u32 %s20, 2
        %s874 = sadd.s32 %s873, %s21
        %p875 = scmp.lt.s32.totalorder %s874, 1
        %s876 = scalar_select %p875, %s874, 1
        %s877 = scalar_lea.vmem %s4, %s876
        // Predicated region
        $region74: #{ext_vq_forward.1} parent=68 // pred_check
          %p878 = pneg %p118
        $region75: #{ext_vq_forward.1} parent=68 // pred_check_branch
          %880 = sbr.rel (%p878) target = $region77
        $region76: #{ext_vq_forward.1} parent=68 // pred_region
          %s881 = smul.u32 2, %s20
          %s882 = smul.addr %s881, 2
          %s883 = sadd.s32 %s21, %s882
          %s884 = smul.addr %s883, 4
          %s885 = scalar_lea.vmem %s3, %s884
          // Predicated region
          $region78: #{ext_vq_forward.1} parent=76 // pred_check
            _
          $region79: #{ext_vq_forward.1} parent=76 // pred_check_branch
            %887 = sbr.rel (0) target = $region81
          $region80: #{ext_vq_forward.1} parent=76 // pred_region
            // Predicated region
            $region82: #{ext_vq_forward.1} parent=80 // pred_check
              _
            $region83: #{ext_vq_forward.1} parent=80 // pred_check_branch
              %889 = sbr.rel target = $region85
            $region84: #{ext_vq_forward.1} parent=80 // pred_region
              // Predicated region
              $region97: #{ext_vq_forward.1} parent=84 // pred_check
                _
              $region98: #{ext_vq_forward.1} parent=84 // pred_check_branch
                %906 = sbr.rel (0) target = $region100
              $region99: #{ext_vq_forward.1} parent=84 // pred_region
                loop: start=0, step=1, limit=1
                $region101: #{ext_vq_forward.1} parent=99 // loop_pre_header
                  _
                $region102: #{ext_vq_forward.1} parent=99 // loop_header
                  %s908 = sphi 0, %s912
                  %p909 = scmp.ge.s32.totalorder %s908, 1
                  %s913 = sphi %s872, %s872
                  %s914 = sphi %s885, %s885
                $region103: #{ext_vq_forward.1} parent=99 // loop_header_branch
                  %911 = sbr.rel (%p909) target = $region107
                $region104: #{ext_vq_forward.1} parent=99 // loop_body
                  _
                $region105: #{ext_vq_forward.1} parent=99 // loop_footer
                  %s912 = sadd.s32 1, %s908
                $region106: #{ext_vq_forward.1} parent=99 // loop_footer_branch
                  %907 = sbr.rel target = $region102
                $region107: #{ext_vq_forward.1} parent=99 // loop_exit
                  _
                loop: start=0, step=1, limit=1
                $region108: #{ext_vq_forward.1} parent=99 // loop_pre_header
                  _
                $region109: #{ext_vq_forward.1} parent=99 // loop_header
                  %s917 = sphi 0, %s921
                  %p918 = scmp.ge.s32.totalorder %s917, 1
                  %s922 = sphi %s872, %s872
                  %s923 = sphi %s885, %s885
                $region110: #{ext_vq_forward.1} parent=99 // loop_header_branch
                  %920 = sbr.rel (%p918) target = $region114
                $region111: #{ext_vq_forward.1} parent=99 // loop_body
                  %v924 = vld [vmem:[%s922] sm:$0xf]
                  %925 = vst [vmem:[%s923] sm:$0xf] %v924
                  %v926 = vld [vmem:[%s922 + $0x4] sm:$0xf]
                  %927 = vst [vmem:[%s923 + $0x8] sm:$0xf] %v926
                $region112: #{ext_vq_forward.1} parent=99 // loop_footer
                  %s921 = sadd.s32 1, %s917
                $region113: #{ext_vq_forward.1} parent=99 // loop_footer_branch
                  %916 = sbr.rel target = $region109
                $region114: #{ext_vq_forward.1} parent=99 // loop_exit
                  _
              $region100: #{ext_vq_forward.1} parent=84 // pred_fallthru
                _
            $region85: #{ext_vq_forward.1} parent=80 // pred_fallthru
              _
            // Predicated region
            $region86: #{ext_vq_forward.1} parent=80 // pred_check
              _
            $region87: #{ext_vq_forward.1} parent=80 // pred_check_branch
              %891 = sbr.rel (0) target = $region89
            $region88: #{ext_vq_forward.1} parent=80 // pred_region
              loop: start=0, step=1, limit=1
              $region90: #{ext_vq_forward.1} parent=88 // loop_pre_header
                _
              $region91: #{ext_vq_forward.1} parent=88 // loop_header
                %s894 = sphi 0, %s898
                %p895 = scmp.ge.s32.totalorder %s894, 1
                %s899 = sphi %s872, %s872
                %s900 = sphi %s885, %s885
              $region92: #{ext_vq_forward.1} parent=88 // loop_header_branch
                %897 = sbr.rel (%p895) target = $region96
              $region93: #{ext_vq_forward.1} parent=88 // loop_body
                %v901 = vld [vmem:[%s899] sm:$0xf]
                %902 = vst [vmem:[%s900] sm:$0xf] %v901
                %v903 = vld [vmem:[%s899 + $0x4] sm:$0xf]
                %904 = vst [vmem:[%s900 + $0x8] sm:$0xf] %v903
              $region94: #{ext_vq_forward.1} parent=88 // loop_footer
                %s898 = sadd.s32 1, %s894
              $region95: #{ext_vq_forward.1} parent=88 // loop_footer_branch
                %893 = sbr.rel target = $region91
              $region96: #{ext_vq_forward.1} parent=88 // loop_exit
                _
            $region89: #{ext_vq_forward.1} parent=80 // pred_fallthru
              _
          $region81: #{ext_vq_forward.1} parent=76 // pred_fallthru
            _
          %928 = vnop
        $region77: #{ext_vq_forward.1} parent=68 // pred_fallthru
          _
        // Predicated region
        $region115: #{ext_vq_forward.1} parent=68 // pred_check
          %p929 = pneg %p148
        $region116: #{ext_vq_forward.1} parent=68 // pred_check_branch
          %931 = sbr.rel (%p929) target = $region118
        $region117: #{ext_vq_forward.1} parent=68 // pred_region
          %s932 = smul.u32 %s20, 2
          %s933 = sadd.s32 %s932, %s21
        $region118: #{ext_vq_forward.1} parent=68 // pred_fallthru
          _
      $region69: #{ext_vq_forward.1} parent=5 // pred_fallthru
        _
      %p934 = scmp.le.s32.totalorder 2, %s11
      // Predicated region
      $region119: #{ext_vq_forward.1} parent=5 // pred_check
        %p935 = pneg %p934
      $region120: #{ext_vq_forward.1} parent=5 // pred_check_branch
        %937 = sbr.rel (%p935) target = $region122
      $region121: #{ext_vq_forward.1} parent=5 // pred_region
        %s938 = ssub.s32 %s11, 2
        // Predicated region
        $region123: #{ext_vq_forward.1} parent=121 // pred_check
          %p939 = pneg %p124
        $region124: #{ext_vq_forward.1} parent=121 // pred_check_branch
          %941 = sbr.rel (%p939) target = $region126
        $region125: #{ext_vq_forward.1} parent=121 // pred_region
          %s942 = sand.u32 %s109, 1
          %s943 = sand.u32 %s109, 1
          %s944 = smul.addr %s943, 8
          %s945 = scalar_lea.vmem [#allocation3], %s944
        $region126: #{ext_vq_forward.1} parent=121 // pred_fallthru
          _
        // Predicated region
        $region127: #{ext_vq_forward.1} parent=121 // pred_check
          %p946 = pneg %p154
        $region128: #{ext_vq_forward.1} parent=121 // pred_check_branch
          %948 = sbr.rel (%p946) target = $region130
        $region129: #{ext_vq_forward.1} parent=121 // pred_region
          %s949 = smul.u32 %s22, 2
          %s950 = sadd.s32 %s949, %s23
          %p951 = scmp.lt.s32.totalorder %s950, 1
          %s952 = scalar_select %p951, %s950, 1
          %s953 = scalar_lea.vmem %s4, %s952
        $region130: #{ext_vq_forward.1} parent=121 // pred_fallthru
          _
      $region122: #{ext_vq_forward.1} parent=5 // pred_fallthru
        _
    $region6: #{ext_vq_forward.1} parent=1 // loop_footer
      %s15 = sadd.s32 1, %s11
    $region7: #{ext_vq_forward.1} parent=1 // loop_footer_branch
      %10 = sbr.rel target = $region3
    $region8: #{ext_vq_forward.1} parent=1 // loop_exit
      _

</llo_original>
